<compile_context>
chip_gen: v7x
topology: tpu7x:2x2x1
jax: 0.10.0
libtpu: 0.0.40
codegen_flags: <defaults>
</compile_context>

<pallas_src>
import functools

import jax
import jax.numpy as jnp
import numpy as np
from jax import lax
from jax.experimental import pallas as pl
from jax.experimental.pallas import tpu as pltpu

# ----------------------------- config ---------------------------------------
B, C, H, W = 8, 4, 8, 8          # demo batch, channels, height, width
D = C * H * W                    # flattened observation dim = 256
HID = 32                         # hidden width of the toy policy MLP
A = 8                            # number of discrete actions
CLIP_PARAM = 0.2
ENTCOEFF = 0.01

HEAD_W = 128                     # lane-padded fused-head width: [logits_o|logits_n|value_n|0..]
OUT_W = 128                      # lane-padded output row width
MAX_TILE = 1024                  # batch-tile cap (multiple of 8); 2x-buffered ob tile (2 MB f32)
                                 # fits even v5e's 16 MiB scoped-VMEM default with room to spare


# ----------------------------- kernel ---------------------------------------
def _ppo_loss_kernel(
    ob_ref, side_ref,                            # per-batch-tile data (one DMA each)
    w1_ref, b1_ref, wh_ref, bh_ref,              # fused/packed parameters
    out_ref,                                     # (1, OUT_W) per-core-split output row
    acc_ref,                                     # (1, 4) VMEM accumulator scratch
    *, clip, entcoeff, n_actions, tile_b, n_valid, need_mask,
):
    # ---- fused first layer for BOTH policies: one (TB,D)x(D,2*HID) matmul ----
    h = jnp.tanh(
        jnp.dot(ob_ref[...], w1_ref[...], preferred_element_type=jnp.float32)
        + b1_ref[...])

    # ---- fused block-diagonal head: one (TB,2*HID)x(2*HID,128) matmul ----
    # lanes [0:A)  = oldpi logits, [A:2A) = pi logits, [2A] = pi value, rest 0.
    head = (jnp.dot(h.astype(wh_ref.dtype), wh_ref[...],
                    preferred_element_type=jnp.float32) + bh_ref[...])

    two_a = 2 * n_actions
    lo = head[:, 0:two_a]                         # (TB, 2A)  old|new logits together
    value_n = head[:, two_a:two_a + 1]            # (TB, 1)   new-policy value

    # ---- log-softmax with a SHARED max shift (softmax is shift-invariant, so
    #      this is exact); one sub + one exp sweep over 16 lanes instead of two.
    m = jnp.max(lo, axis=-1, keepdims=True)
    a01 = lo - m
    ea01 = jnp.exp(a01)
    a0 = a01[:, 0:n_actions]
    a1 = a01[:, n_actions:two_a]
    z0 = jnp.sum(ea01[:, 0:n_actions], axis=-1, keepdims=True)
    z1 = jnp.sum(ea01[:, n_actions:two_a], axis=-1, keepdims=True)
    p0 = ea01[:, 0:n_actions] / z0                # exact divide (tiny; better numerics
    p1 = ea01[:, n_actions:two_a] / z1            #  than approx reciprocal)
    logz0 = jnp.log(z0)
    logz1 = jnp.log(z1)
    dlz = logz1 - logz0

    # KL(oldpi||pi) and entropy(pi) per row (uses sum(p)=1 to hoist log terms)
    d = a1 - a0
    kl_row = dlz - jnp.sum(p0 * d, axis=-1, keepdims=True)                 # (TB,1)
    ent_row = logz1 - jnp.sum(p1 * a1, axis=-1, keepdims=True)             # (TB,1)

    # ---- clipped surrogate: logp_new - logp_old at taken action ----
    ac = side_ref[:, 0:1].astype(jnp.int32)       # packed side array: [ac|atarg|ret|0..]
    atarg = side_ref[:, 1:2]
    ret = side_ref[:, 2:3]
    col_ids = lax.broadcasted_iota(jnp.int32, (tile_b, n_actions), 1)
    onehot = (col_ids == ac).astype(jnp.float32)
    d_sel = jnp.sum(onehot * d, axis=-1, keepdims=True)                    # (TB,1)
    ratio = jnp.exp(d_sel - dlz)
    surr1 = ratio * atarg
    surr2 = jnp.clip(ratio, 1.0 - clip, 1.0 + clip) * atarg
    min_surr = jnp.minimum(surr1, surr2)

    # ---- value loss term ----
    diff = value_n - ret
    sq = diff * diff

    # ---- single batch-axis reduction of all four terms ----
    stacked = jnp.concatenate([kl_row, ent_row, min_surr, sq], axis=1)     # (TB, 4)
    if need_mask:   # static: only emitted when the batch was padded host-side
        row0 = (pl.program_id(0) * pl.num_programs(1) + pl.program_id(1)) * tile_b
        rows = lax.broadcasted_iota(jnp.int32, (tile_b, 4), 0) + row0
        stacked = jnp.where(rows < n_valid, stacked, 0.0)
    partial = jnp.sum(stacked, axis=0, keepdims=True)                      # (1, 4)

    @pl.when(pl.program_id(1) == 0)
    def _():
        acc_ref[...] = jnp.zeros_like(acc_ref)

    acc_ref[...] += partial

    # ---- finalize: map the 4 sums to the 6 loss scalars with one tiny matmul.
    #      The coefficient matrix is built in-register from compile-time constants
    #      (no extra HBM operand / DMA); output is a lane-dense (1, OUT_W) store.
    @pl.when(pl.program_id(1) == pl.num_programs(1) - 1)
    def _():
        inv_n = 1.0 / float(n_valid)
        r = lax.broadcasted_iota(jnp.int32, (4, out_ref.shape[1]), 0)
        c = lax.broadcasted_iota(jnp.int32, (4, out_ref.shape[1]), 1)

        def coef_at(rr, cc, v):
            return jnp.where((r == rr) & (c == cc), v, 0.0)

        # acc lanes: [sum_kl, sum_ent, sum_min_surr, sum_sq]
        # out cols : 0 total, 1 pol_surr, 2 pol_entpen, 3 vf, 4 mean_kl, 5 mean_ent
        coef = (coef_at(0, 4, inv_n)                       # mean_kl
                + coef_at(1, 5, inv_n)                     # mean_ent
                + coef_at(1, 2, -entcoeff * inv_n)         # pol_entpen
                + coef_at(1, 0, -entcoeff * inv_n)         #   -> total
                + coef_at(2, 1, -inv_n)                    # pol_surr
                + coef_at(2, 0, -inv_n)                    #   -> total
                + coef_at(3, 3, inv_n)                     # vf_loss
                + coef_at(3, 0, inv_n)).astype(jnp.float32)  #  -> total
        out_ref[...] = jnp.dot(acc_ref[...], coef,
                               preferred_element_type=jnp.float32)         # (1, 128)


# ----------------------------- wrapper ---------------------------------------
def _pack_params(oldpi_params, pi_params):
    """Host-side layout plumbing: fuse the two policies' weights."""
    w1o, b1o, w2o, b2o, _wvo, _bvo = oldpi_params   # oldpi value head is dead code
    w1n, b1n, w2n, b2n, wvn, bvn = pi_params

    w1p = jnp.concatenate([w1o, w1n], axis=1).astype(jnp.float32)   # (D, 2*HID)
    b1p = jnp.concatenate([b1o, b1n], axis=1).astype(jnp.float32)   # (1, 2*HID)

    wh = jnp.zeros((2 * HID, HEAD_W), jnp.float32)
    wh = wh.at[:HID, 0:A].set(w2o)
    wh = wh.at[HID:, A:2 * A].set(w2n)
    wh = wh.at[HID:, 2 * A:2 * A + 1].set(wvn)
    bh = jnp.zeros((1, HEAD_W), jnp.float32)
    bh = bh.at[:, 0:A].set(b2o)
    bh = bh.at[:, A:2 * A].set(b2n)
    bh = bh.at[:, 2 * A:2 * A + 1].set(bvn)
    return w1p, b1p, wh, bh


def _round_up(x, m):
    return ((x + m - 1) // m) * m


def _num_core_splits(n_tiles):
    """2 on v7x (two TensorCores per chip) when there is enough work, else 1."""
    if n_tiles < 2:
        return 1
    try:
        kind = jax.devices()[0].device_kind.lower()
    except Exception:
        return 1
    return 2 if "v7" in kind else 1


def ppo_forward(ob_nchw, ac, atarg, ret, lr_mult, oldpi_params, pi_params, *,
                clip_param=CLIP_PARAM, entcoeff=ENTCOEFF,
                matmul_dtype=jnp.float32, max_tile=MAX_TILE):
    """Returns a (6,) f32 vector: [total, pol_surr, pol_entpen, vf, kl, ent]."""
    b = ob_nchw.shape[0]
    ob_flat = ob_nchw.reshape(b, -1).astype(jnp.float32)   # glue: flatten NCHW
    d = ob_flat.shape[1]

    # Pack ac / atarg / ret into ONE lane-padded (b, 8) side array -> 1 DMA/tile.
    side = jnp.zeros((b, 8), jnp.float32)
    side = side.at[:, 0].set(ac.astype(jnp.float32))       # small ints: exact in f32
    side = side.at[:, 1].set(atarg.astype(jnp.float32))
    side = side.at[:, 2].set(ret.astype(jnp.float32))

    w1p, b1p, wh, bh = _pack_params(oldpi_params, pi_params)
    hid2 = w1p.shape[1]

    # --- tiling: large batch tiles, pad the batch, mask padded rows in-kernel ---
    tb = min(_round_up(b, 8), max_tile)
    n_tiles = -(-b // tb)
    n_splits = _num_core_splits(n_tiles)                   # v7x: one output row per TC
    n_tiles = _round_up(n_tiles, n_splits)
    tiles_per_split = n_tiles // n_splits
    b_pad = n_tiles * tb
    if b_pad != b:
        ob_flat = jnp.pad(ob_flat, ((0, b_pad - b), (0, 0)))
        side = jnp.pad(side, ((0, b_pad - b), (0, 0)))

    # Optional bf16 matmul stream (halves ob HBM traffic; accumulation stays f32).
    ob_cast = ob_flat.astype(matmul_dtype)
    w1c = w1p.astype(matmul_dtype)
    whc = wh.astype(matmul_dtype)

    clip = float(clip_param) * float(lr_mult)              # lr_mult folded host-side

    kernel = functools.partial(
        _ppo_loss_kernel, clip=clip, entcoeff=float(entcoeff),
        n_actions=A, tile_b=tb, n_valid=b, need_mask=(b_pad != b))

    row_idx = lambda s, t: (s * tiles_per_split + t, 0)

    out = pl.pallas_call(
        kernel,
        out_shape=jax.ShapeDtypeStruct((n_splits, OUT_W), jnp.float32),
        grid=(n_splits, tiles_per_split),
        in_specs=[
            pl.BlockSpec((tb, d), row_idx),                        # ob
            pl.BlockSpec((tb, 8), row_idx),                        # packed ac|atarg|ret
            pl.BlockSpec((d, hid2), lambda s, t: (0, 0)),          # fused W1
            pl.BlockSpec((1, hid2), lambda s, t: (0, 0)),          # fused b1
            pl.BlockSpec((2 * HID, HEAD_W), lambda s, t: (0, 0)),  # fused head W
            pl.BlockSpec((1, HEAD_W), lambda s, t: (0, 0)),        # fused head b
        ],
        out_specs=pl.BlockSpec((1, OUT_W), lambda s, t: (s, 0)),
        scratch_shapes=[pltpu.VMEM((1, 4), jnp.float32)],
        compiler_params=pltpu.CompilerParams(
            dimension_semantics=("parallel", "arbitrary")),  # cores x accumulation
    )(ob_cast, side, w1c, b1p, whc, bh)

    # Per-split rows are partial sums of a linear map -> summing them is exact.
    return jnp.sum(out, axis=0)[:6]


# ----------------------------- pure-JAX reference -----------------------------
def _ref_forward(ob_nchw, ac, atarg, ret, lr_mult, oldp, newp,
                 clip_param=CLIP_PARAM, entcoeff=ENTCOEFF):
    b = ob_nchw.shape[0]
    ob = ob_nchw.reshape(b, -1).astype(jnp.float32)

    def policy(p):
        w1, b1, w2, b2, wv, bv = p
        h = jnp.tanh(ob @ w1 + b1)
        return h @ w2 + b2, h @ wv + bv

    logits_o, _ = policy(oldp)
    logits_n, value_n = policy(newp)

    def logsumexp_parts(l):
        a = l - jnp.max(l, -1, keepdims=True)
        ea = jnp.exp(a)
        z = jnp.sum(ea, -1, keepdims=True)
        return a, ea, z

    a0, ea0, z0 = logsumexp_parts(logits_o)
    a1, ea1, z1 = logsumexp_parts(logits_n)
    p0, p1 = ea0 / z0, ea1 / z1
    kl = jnp.sum(p0 * (a0 - jnp.log(z0) - a1 + jnp.log(z1)), -1)
    ent = jnp.sum(p1 * (jnp.log(z1) - a1), -1)
    mean_kl, mean_ent = jnp.mean(kl), jnp.mean(ent)
    pol_entpen = -mean_ent * entcoeff

    lp_o = jnp.take_along_axis(a0 - jnp.log(z0), ac.reshape(-1, 1), axis=1)[:, 0]
    lp_n = jnp.take_along_axis(a1 - jnp.log(z1), ac.reshape(-1, 1), axis=1)[:, 0]
    ratio = jnp.exp(lp_n - lp_o)
    clip = clip_param * lr_mult
    surr1 = ratio * atarg
    surr2 = jnp.clip(ratio, 1.0 - clip, 1.0 + clip) * atarg
    pol_surr = -jnp.mean(jnp.minimum(surr1, surr2))
    vf = jnp.mean((value_n[:, 0] - ret) ** 2)
    total = pol_surr + pol_entpen + vf
    return jnp.stack([total, pol_surr, pol_entpen, vf, mean_kl, mean_ent])


# ----------------------------- main -------------------------------------------
def _init_policy_params(key, scale=0.1):
    k1, k2, k3 = jax.random.split(key, 3)
    w1 = scale * jax.random.normal(k1, (D, HID), jnp.float32)
    b1 = jnp.zeros((1, HID), jnp.float32)
    w2 = scale * jax.random.normal(k2, (HID, A), jnp.float32)
    b2 = jnp.zeros((1, A), jnp.float32)
    wv = scale * jax.random.normal(k3, (HID, 1), jnp.float32)
    bv = jnp.zeros((1, 1), jnp.float32)
    return (w1, b1, w2, b2, wv, bv)


if __name__ == "__main__":
    # TODO(synk): the trajectory generator, GAE advantage computation and Adam
    # updates in PPO.run() remain host-side JAX/NumPy; only forward() is a kernel.
    key = jax.random.PRNGKey(0)
    k_ob, k_ac, k_at, k_rt, k_old, k_new = jax.random.split(key, 6)

    ob = jax.random.normal(k_ob, (B, C, H, W), jnp.float32)      # NCHW
    ac = jax.random.randint(k_ac, (B,), 0, A, jnp.int32)
    atarg = jax.random.normal(k_at, (B,), jnp.float32)
    ret = jax.random.normal(k_rt, (B,), jnp.float32)
    lr_mult = 0.75

    oldpi_params = _init_policy_params(k_old)
    pi_params = _init_policy_params(k_new)

    out = ppo_forward(ob, ac, atarg, ret, lr_mult, oldpi_params, pi_params)
    out = jax.block_until_ready(out)

    ref = _ref_forward(ob, ac, atarg, ret, lr_mult, oldpi_params, pi_params)
    np.testing.assert_allclose(np.asarray(out), np.asarray(ref),
                               rtol=1e-3, atol=1e-5)

    print("KERNEL_OK")
</pallas_src>

<mosaic_0001>
module attributes {stable_mosaic.version = 11 : i64} {
  func.func @_ppo_loss_kernel(%arg0: i32, %arg1: i32, %arg2: memref<8x256xf32, #tpu.memory_space<vmem>>, %arg3: memref<8x8xf32, #tpu.memory_space<vmem>>, %arg4: memref<256x64xf32, #tpu.memory_space<vmem>>, %arg5: memref<1x64xf32, #tpu.memory_space<vmem>>, %arg6: memref<64x128xf32, #tpu.memory_space<vmem>>, %arg7: memref<1x128xf32, #tpu.memory_space<vmem>>, %arg8: memref<1x128xf32, #tpu.memory_space<vmem>>, %arg9: memref<1x4xf32, #tpu.memory_space<vmem>>) attributes {dimension_semantics = [#tpu.dimension_semantics<parallel>, #tpu.dimension_semantics<arbitrary>], iteration_bounds = array<i64: 1, 1>, scalar_prefetch = 0 : i64, scratch_operands = 1 : i64, tpu.core_type = #tpu.core_type<tc>, window_params = [{transform_indices = @transform_0, window_bounds = array<i64: 8, 256>}, {transform_indices = @transform_1, window_bounds = array<i64: 8, 8>}, {pipeline_mode = #tpu.pipeline_mode<synchronous>, transform_indices = @transform_2, window_bounds = array<i64: 256, 64>}, {pipeline_mode = #tpu.pipeline_mode<synchronous>, transform_indices = @transform_3, window_bounds = array<i64: 1, 64>}, {pipeline_mode = #tpu.pipeline_mode<synchronous>, transform_indices = @transform_4, window_bounds = array<i64: 64, 128>}, {pipeline_mode = #tpu.pipeline_mode<synchronous>, transform_indices = @transform_5, window_bounds = array<i64: 1, 128>}, {transform_indices = @transform_6, window_bounds = array<i64: 1, 128>}]} {
    %c0 = arith.constant 0 : index
    %c0_0 = arith.constant 0 : index
    %0 = vector.load %arg2[%c0, %c0_0] : memref<8x256xf32, #tpu.memory_space<vmem>>, vector<8x256xf32>
    %c0_1 = arith.constant 0 : index
    %c0_2 = arith.constant 0 : index
    %1 = vector.load %arg4[%c0_1, %c0_2] : memref<256x64xf32, #tpu.memory_space<vmem>>, vector<256x64xf32>
    %cst = arith.constant dense<0.000000e+00> : vector<8x64xf32>
    %2 = tpu.matmul %0, %1, %cst {dimension_numbers = #tpu.dot_dimension_numbers<[1], [0], [0], [1], [0, 0, 1, 1], [], []>} : vector<8x256xf32>, vector<256x64xf32>, vector<8x64xf32> -> vector<8x64xf32>
    %c0_3 = arith.constant 0 : index
    %c0_4 = arith.constant 0 : index
    %3 = vector.load %arg5[%c0_3, %c0_4] : memref<1x64xf32, #tpu.memory_space<vmem>>, vector<1x64xf32>
    %4 = vector.broadcast %3 : vector<1x64xf32> to vector<8x64xf32>
    %5 = arith.addf %2, %4 : vector<8x64xf32>
    %6 = math.tanh %5 : vector<8x64xf32>
    %c0_5 = arith.constant 0 : index
    %c0_6 = arith.constant 0 : index
    %7 = vector.load %arg6[%c0_5, %c0_6] : memref<64x128xf32, #tpu.memory_space<vmem>>, vector<64x128xf32>
    %cst_7 = arith.constant dense<0.000000e+00> : vector<8x128xf32>
    %8 = tpu.matmul %6, %7, %cst_7 {dimension_numbers = #tpu.dot_dimension_numbers<[1], [0], [0], [1], [0, 0, 1, 1], [], []>} : vector<8x64xf32>, vector<64x128xf32>, vector<8x128xf32> -> vector<8x128xf32>
    %c0_8 = arith.constant 0 : index
    %c0_9 = arith.constant 0 : index
    %9 = vector.load %arg7[%c0_8, %c0_9] : memref<1x128xf32, #tpu.memory_space<vmem>>, vector<1x128xf32>
    %10 = vector.broadcast %9 : vector<1x128xf32> to vector<8x128xf32>
    %11 = arith.addf %8, %10 : vector<8x128xf32>
    %12 = vector.extract_strided_slice %11 {offsets = [0, 0], sizes = [8, 16], strides = [1, 1]} : vector<8x128xf32> to vector<8x16xf32>
    %13 = vector.extract_strided_slice %11 {offsets = [0, 16], sizes = [8, 1], strides = [1, 1]} : vector<8x128xf32> to vector<8x1xf32>
    %cst_10 = arith.constant dense<0xFF800000> : vector<8xf32>
    %14 = vector.multi_reduction <maximumf>, %12, %cst_10 [1] : vector<8x16xf32> to vector<8xf32>
    %15 = vector.shape_cast %14 : vector<8xf32> to vector<8x1xf32>
    %16 = vector.broadcast %15 : vector<8x1xf32> to vector<8x16xf32>
    %17 = arith.subf %12, %16 : vector<8x16xf32>
    %18 = math.exp %17 : vector<8x16xf32>
    %19 = vector.extract_strided_slice %17 {offsets = [0, 0], sizes = [8, 8], strides = [1, 1]} : vector<8x16xf32> to vector<8x8xf32>
    %20 = vector.extract_strided_slice %17 {offsets = [0, 8], sizes = [8, 8], strides = [1, 1]} : vector<8x16xf32> to vector<8x8xf32>
    %21 = vector.extract_strided_slice %18 {offsets = [0, 0], sizes = [8, 8], strides = [1, 1]} : vector<8x16xf32> to vector<8x8xf32>
    %cst_11 = arith.constant dense<0.000000e+00> : vector<8xf32>
    %22 = vector.multi_reduction <add>, %21, %cst_11 [1] : vector<8x8xf32> to vector<8xf32>
    %23 = vector.shape_cast %22 : vector<8xf32> to vector<8x1xf32>
    %24 = vector.extract_strided_slice %18 {offsets = [0, 8], sizes = [8, 8], strides = [1, 1]} : vector<8x16xf32> to vector<8x8xf32>
    %cst_12 = arith.constant dense<0.000000e+00> : vector<8xf32>
    %25 = vector.multi_reduction <add>, %24, %cst_12 [1] : vector<8x8xf32> to vector<8xf32>
    %26 = vector.shape_cast %25 : vector<8xf32> to vector<8x1xf32>
    %27 = vector.extract_strided_slice %18 {offsets = [0, 0], sizes = [8, 8], strides = [1, 1]} : vector<8x16xf32> to vector<8x8xf32>
    %28 = vector.broadcast %23 : vector<8x1xf32> to vector<8x8xf32>
    %29 = arith.divf %27, %28 : vector<8x8xf32>
    %30 = vector.extract_strided_slice %18 {offsets = [0, 8], sizes = [8, 8], strides = [1, 1]} : vector<8x16xf32> to vector<8x8xf32>
    %31 = vector.broadcast %26 : vector<8x1xf32> to vector<8x8xf32>
    %32 = arith.divf %30, %31 : vector<8x8xf32>
    %33 = math.log %23 : vector<8x1xf32>
    %34 = math.log %26 : vector<8x1xf32>
    %35 = arith.subf %34, %33 : vector<8x1xf32>
    %36 = arith.subf %20, %19 : vector<8x8xf32>
    %37 = arith.mulf %29, %36 : vector<8x8xf32>
    %cst_13 = arith.constant dense<0.000000e+00> : vector<8xf32>
    %38 = vector.multi_reduction <add>, %37, %cst_13 [1] : vector<8x8xf32> to vector<8xf32>
    %39 = vector.shape_cast %38 : vector<8xf32> to vector<8x1xf32>
    %40 = arith.subf %35, %39 : vector<8x1xf32>
    %41 = arith.mulf %32, %20 : vector<8x8xf32>
    %cst_14 = arith.constant dense<0.000000e+00> : vector<8xf32>
    %42 = vector.multi_reduction <add>, %41, %cst_14 [1] : vector<8x8xf32> to vector<8xf32>
    %43 = vector.shape_cast %42 : vector<8xf32> to vector<8x1xf32>
    %44 = arith.subf %34, %43 : vector<8x1xf32>
    %c0_15 = arith.constant 0 : index
    %c0_16 = arith.constant 0 : index
    %45 = vector.load %arg3[%c0_15, %c0_16] : memref<8x8xf32, #tpu.memory_space<vmem>>, vector<8x1xf32>
    %46 = arith.fptosi %45 : vector<8x1xf32> to vector<8x1xi32>
    %c0_17 = arith.constant 0 : index
    %c1 = arith.constant 1 : index
    %47 = vector.load %arg3[%c0_17, %c1] : memref<8x8xf32, #tpu.memory_space<vmem>>, vector<8x1xf32>
    %c0_18 = arith.constant 0 : index
    %c2 = arith.constant 2 : index
    %48 = vector.load %arg3[%c0_18, %c2] : memref<8x8xf32, #tpu.memory_space<vmem>>, vector<8x1xf32>
    %49 = tpu.iota {dimensions = array<i32: 1>} : vector<8x8xi32>
    %50 = vector.broadcast %46 : vector<8x1xi32> to vector<8x8xi32>
    %51 = arith.cmpi eq, %49, %50 : vector<8x8xi32>
    %52 = arith.extui %51 : vector<8x8xi1> to vector<8x8xi32>
    %53 = arith.sitofp %52 : vector<8x8xi32> to vector<8x8xf32>
    %54 = arith.mulf %53, %36 : vector<8x8xf32>
    %cst_19 = arith.constant dense<0.000000e+00> : vector<8xf32>
    %55 = vector.multi_reduction <add>, %54, %cst_19 [1] : vector<8x8xf32> to vector<8xf32>
    %56 = vector.shape_cast %55 : vector<8xf32> to vector<8x1xf32>
    %57 = arith.subf %56, %35 : vector<8x1xf32>
    %58 = math.exp %57 : vector<8x1xf32>
    %59 = arith.mulf %58, %47 : vector<8x1xf32>
    %cst_20 = arith.constant 8.500000e-01 : f32
    %cst_21 = arith.constant 1.150000e+00 : f32
    %60 = vector.broadcast %cst_20 : f32 to vector<8x1xf32>
    %61 = arith.maximumf %60, %58 : vector<8x1xf32>
    %62 = vector.broadcast %cst_21 : f32 to vector<8x1xf32>
    %63 = arith.minimumf %62, %61 : vector<8x1xf32>
    %64 = arith.mulf %63, %47 : vector<8x1xf32>
    %65 = arith.minimumf %59, %64 : vector<8x1xf32>
    %66 = arith.subf %13, %48 : vector<8x1xf32>
    %67 = arith.mulf %66, %66 : vector<8x1xf32>
    %68 = tpu.concatenate %40, %44, %65, %67 in 1 : vector<8x1xf32>, vector<8x1xf32>, vector<8x1xf32>, vector<8x1xf32> -> vector<8x4xf32>
    %cst_22 = arith.constant dense<0.000000e+00> : vector<4xf32>
    %69 = vector.multi_reduction <add>, %68, %cst_22 [0] : vector<8x4xf32> to vector<4xf32>
    %70 = vector.shape_cast %69 : vector<4xf32> to vector<1x4xf32>
    %c0_i32 = arith.constant 0 : i32
    %71 = arith.cmpi eq, %arg1, %c0_i32 : i32
    %72 = arith.extui %71 : i1 to i32
    %c0_i32_23 = arith.constant 0 : i32
    %73 = arith.cmpi ne, %72, %c0_i32_23 : i32
    scf.if %73 {
      %cst_30 = arith.constant 0.000000e+00 : f32
      %80 = vector.broadcast %cst_30 : f32 to vector<1x4xf32>
      %c0_31 = arith.constant 0 : index
      %c0_32 = arith.constant 0 : index
      %81 = vector.load %arg9[%c0_31, %c0_32] : memref<1x4xf32, #tpu.memory_space<vmem>>, vector<1x4xf32>
      tpu.vector_store %arg9[%c0_31, %c0_32], %80 {strides = array<i32>} : memref<1x4xf32, #tpu.memory_space<vmem>>, vector<1x4xf32>,
    } else {
    }
    %c0_24 = arith.constant 0 : index
    %c0_25 = arith.constant 0 : index
    %74 = vector.load %arg9[%c0_24, %c0_25] : memref<1x4xf32, #tpu.memory_space<vmem>>, vector<1x4xf32>
    %75 = arith.addf %74, %70 : vector<1x4xf32>
    %c0_26 = arith.constant 0 : index
    %c0_27 = arith.constant 0 : index
    %76 = vector.load %arg9[%c0_26, %c0_27] : memref<1x4xf32, #tpu.memory_space<vmem>>, vector<1x4xf32>
    tpu.vector_store %arg9[%c0_26, %c0_27], %75 {strides = array<i32>} : memref<1x4xf32, #tpu.memory_space<vmem>>, vector<1x4xf32>,
    %c0_i32_28 = arith.constant 0 : i32
    %77 = arith.cmpi eq, %arg1, %c0_i32_28 : i32
    %78 = arith.extui %77 : i1 to i32
    %c0_i32_29 = arith.constant 0 : i32
    %79 = arith.cmpi ne, %78, %c0_i32_29 : i32
    scf.if %79 {
      %80 = tpu.iota {dimensions = array<i32: 0>} : vector<4x128xi32>
      %81 = tpu.iota {dimensions = array<i32: 1>} : vector<4x128xi32>
      %c0_i32_30 = arith.constant 0 : i32
      %82 = vector.broadcast %c0_i32_30 : i32 to vector<4x128xi32>
      %83 = arith.cmpi eq, %80, %82 : vector<4x128xi32>
      %c4_i32 = arith.constant 4 : i32
      %84 = vector.broadcast %c4_i32 : i32 to vector<4x128xi32>
      %85 = arith.cmpi eq, %81, %84 : vector<4x128xi32>
      %86 = arith.andi %83, %85 : vector<4x128xi1>
      %cst_31 = arith.constant 1.250000e-01 : f32
      %cst_32 = arith.constant 0.000000e+00 : f32
      %87 = vector.broadcast %cst_31 : f32 to vector<4x128xf32>
      %88 = vector.broadcast %cst_32 : f32 to vector<4x128xf32>
      %89 = arith.select %86, %87, %88 : vector<4x128xi1>, vector<4x128xf32>
      %c1_i32 = arith.constant 1 : i32
      %90 = vector.broadcast %c1_i32 : i32 to vector<4x128xi32>
      %91 = arith.cmpi eq, %80, %90 : vector<4x128xi32>
      %c5_i32 = arith.constant 5 : i32
      %92 = vector.broadcast %c5_i32 : i32 to vector<4x128xi32>
      %93 = arith.cmpi eq, %81, %92 : vector<4x128xi32>
      %94 = arith.andi %91, %93 : vector<4x128xi1>
      %cst_33 = arith.constant 1.250000e-01 : f32
      %cst_34 = arith.constant 0.000000e+00 : f32
      %95 = vector.broadcast %cst_33 : f32 to vector<4x128xf32>
      %96 = vector.broadcast %cst_34 : f32 to vector<4x128xf32>
      %97 = arith.select %94, %95, %96 : vector<4x128xi1>, vector<4x128xf32>
      %98 = arith.addf %89, %97 : vector<4x128xf32>
      %c1_i32_35 = arith.constant 1 : i32
      %99 = vector.broadcast %c1_i32_35 : i32 to vector<4x128xi32>
      %100 = arith.cmpi eq, %80, %99 : vector<4x128xi32>
      %c2_i32 = arith.constant 2 : i32
      %101 = vector.broadcast %c2_i32 : i32 to vector<4x128xi32>
      %102 = arith.cmpi eq, %81, %101 : vector<4x128xi32>
      %103 = arith.andi %100, %102 : vector<4x128xi1>
      %cst_36 = arith.constant -1.250000e-03 : f32
      %cst_37 = arith.constant 0.000000e+00 : f32
      %104 = vector.broadcast %cst_36 : f32 to vector<4x128xf32>
      %105 = vector.broadcast %cst_37 : f32 to vector<4x128xf32>
      %106 = arith.select %103, %104, %105 : vector<4x128xi1>, vector<4x128xf32>
      %107 = arith.addf %98, %106 : vector<4x128xf32>
      %c1_i32_38 = arith.constant 1 : i32
      %108 = vector.broadcast %c1_i32_38 : i32 to vector<4x128xi32>
      %109 = arith.cmpi eq, %80, %108 : vector<4x128xi32>
      %c0_i32_39 = arith.constant 0 : i32
      %110 = vector.broadcast %c0_i32_39 : i32 to vector<4x128xi32>
      %111 = arith.cmpi eq, %81, %110 : vector<4x128xi32>
      %112 = arith.andi %109, %111 : vector<4x128xi1>
      %cst_40 = arith.constant -1.250000e-03 : f32
      %cst_41 = arith.constant 0.000000e+00 : f32
      %113 = vector.broadcast %cst_40 : f32 to vector<4x128xf32>
      %114 = vector.broadcast %cst_41 : f32 to vector<4x128xf32>
      %115 = arith.select %112, %113, %114 : vector<4x128xi1>, vector<4x128xf32>
      %116 = arith.addf %107, %115 : vector<4x128xf32>
      %c2_i32_42 = arith.constant 2 : i32
      %117 = vector.broadcast %c2_i32_42 : i32 to vector<4x128xi32>
      %118 = arith.cmpi eq, %80, %117 : vector<4x128xi32>
      %c1_i32_43 = arith.constant 1 : i32
      %119 = vector.broadcast %c1_i32_43 : i32 to vector<4x128xi32>
      %120 = arith.cmpi eq, %81, %119 : vector<4x128xi32>
      %121 = arith.andi %118, %120 : vector<4x128xi1>
      %cst_44 = arith.constant -1.250000e-01 : f32
      %cst_45 = arith.constant 0.000000e+00 : f32
      %122 = vector.broadcast %cst_44 : f32 to vector<4x128xf32>
      %123 = vector.broadcast %cst_45 : f32 to vector<4x128xf32>
      %124 = arith.select %121, %122, %123 : vector<4x128xi1>, vector<4x128xf32>
      %125 = arith.addf %116, %124 : vector<4x128xf32>
      %c2_i32_46 = arith.constant 2 : i32
      %126 = vector.broadcast %c2_i32_46 : i32 to vector<4x128xi32>
      %127 = arith.cmpi eq, %80, %126 : vector<4x128xi32>
      %c0_i32_47 = arith.constant 0 : i32
      %128 = vector.broadcast %c0_i32_47 : i32 to vector<4x128xi32>
      %129 = arith.cmpi eq, %81, %128 : vector<4x128xi32>
      %130 = arith.andi %127, %129 : vector<4x128xi1>
      %cst_48 = arith.constant -1.250000e-01 : f32
      %cst_49 = arith.constant 0.000000e+00 : f32
      %131 = vector.broadcast %cst_48 : f32 to vector<4x128xf32>
      %132 = vector.broadcast %cst_49 : f32 to vector<4x128xf32>
      %133 = arith.select %130, %131, %132 : vector<4x128xi1>, vector<4x128xf32>
      %134 = arith.addf %125, %133 : vector<4x128xf32>
      %c3_i32 = arith.constant 3 : i32
      %135 = vector.broadcast %c3_i32 : i32 to vector<4x128xi32>
      %136 = arith.cmpi eq, %80, %135 : vector<4x128xi32>
      %c3_i32_50 = arith.constant 3 : i32
      %137 = vector.broadcast %c3_i32_50 : i32 to vector<4x128xi32>
      %138 = arith.cmpi eq, %81, %137 : vector<4x128xi32>
      %139 = arith.andi %136, %138 : vector<4x128xi1>
      %cst_51 = arith.constant 1.250000e-01 : f32
      %cst_52 = arith.constant 0.000000e+00 : f32
      %140 = vector.broadcast %cst_51 : f32 to vector<4x128xf32>
      %141 = vector.broadcast %cst_52 : f32 to vector<4x128xf32>
      %142 = arith.select %139, %140, %141 : vector<4x128xi1>, vector<4x128xf32>
      %143 = arith.addf %134, %142 : vector<4x128xf32>
      %c3_i32_53 = arith.constant 3 : i32
      %144 = vector.broadcast %c3_i32_53 : i32 to vector<4x128xi32>
      %145 = arith.cmpi eq, %80, %144 : vector<4x128xi32>
      %c0_i32_54 = arith.constant 0 : i32
      %146 = vector.broadcast %c0_i32_54 : i32 to vector<4x128xi32>
      %147 = arith.cmpi eq, %81, %146 : vector<4x128xi32>
      %148 = arith.andi %145, %147 : vector<4x128xi1>
      %cst_55 = arith.constant 1.250000e-01 : f32
      %cst_56 = arith.constant 0.000000e+00 : f32
      %149 = vector.broadcast %cst_55 : f32 to vector<4x128xf32>
      %150 = vector.broadcast %cst_56 : f32 to vector<4x128xf32>
      %151 = arith.select %148, %149, %150 : vector<4x128xi1>, vector<4x128xf32>
      %152 = arith.addf %143, %151 : vector<4x128xf32>
      %c0_57 = arith.constant 0 : index
      %c0_58 = arith.constant 0 : index
      %153 = vector.load %arg9[%c0_57, %c0_58] : memref<1x4xf32, #tpu.memory_space<vmem>>, vector<1x4xf32>
      %cst_59 = arith.constant dense<0.000000e+00> : vector<1x128xf32>
      %154 = tpu.matmul %153, %152, %cst_59 {dimension_numbers = #tpu.dot_dimension_numbers<[1], [0], [0], [1], [0, 0, 1, 1], [], []>} : vector<1x4xf32>, vector<4x128xf32>, vector<1x128xf32> -> vector<1x128xf32>
      %c0_60 = arith.constant 0 : index
      %c0_61 = arith.constant 0 : index
      %155 = vector.load %arg8[%c0_60, %c0_61] : memref<1x128xf32, #tpu.memory_space<vmem>>, vector<1x128xf32>
      tpu.vector_store %arg8[%c0_60, %c0_61], %154 {strides = array<i32>} : memref<1x128xf32, #tpu.memory_space<vmem>>, vector<1x128xf32>,
    } else {
    }
    return
  }
  func.func @transform_0(%arg0: i32, %arg1: i32) -> (i32, i32) {
    %c1_i32 = arith.constant 1 : i32
    %0 = arith.muli %arg0, %c1_i32 : i32
    %1 = arith.addi %0, %arg1 : i32
    %c0_i32 = arith.constant 0 : i32
    %c0_i32_0 = arith.constant 0 : i32
    return %1, %c0_i32 : i32, i32
  }
  func.func @transform_1(%arg0: i32, %arg1: i32) -> (i32, i32) {
    %c1_i32 = arith.constant 1 : i32
    %0 = arith.muli %arg0, %c1_i32 : i32
    %1 = arith.addi %0, %arg1 : i32
    %c0_i32 = arith.constant 0 : i32
    %c0_i32_0 = arith.constant 0 : i32
    return %1, %c0_i32 : i32, i32
  }
  func.func @transform_2(%arg0: i32, %arg1: i32) -> (i32, i32) {
    %c0_i32 = arith.constant 0 : i32
    %c0_i32_0 = arith.constant 0 : i32
    %c0_i32_1 = arith.constant 0 : i32
    return %c0_i32, %c0_i32_0 : i32, i32
  }
  func.func @transform_3(%arg0: i32, %arg1: i32) -> (i32, i32) {
    %c0_i32 = arith.constant 0 : i32
    %c0_i32_0 = arith.constant 0 : i32
    %c0_i32_1 = arith.constant 0 : i32
    return %c0_i32, %c0_i32_0 : i32, i32
  }
  func.func @transform_4(%arg0: i32, %arg1: i32) -> (i32, i32) {
    %c0_i32 = arith.constant 0 : i32
    %c0_i32_0 = arith.constant 0 : i32
    %c0_i32_1 = arith.constant 0 : i32
    return %c0_i32, %c0_i32_0 : i32, i32
  }
  func.func @transform_5(%arg0: i32, %arg1: i32) -> (i32, i32) {
    %c0_i32 = arith.constant 0 : i32
    %c0_i32_0 = arith.constant 0 : i32
    %c0_i32_1 = arith.constant 0 : i32
    return %c0_i32, %c0_i32_0 : i32, i32
  }
  func.func @transform_6(%arg0: i32, %arg1: i32) -> (i32, i32) {
    %c0_i32 = arith.constant 0 : i32
    %c0_i32_0 = arith.constant 0 : i32
    return %arg0, %c0_i32 : i32, i32
  }
}

</mosaic_0001>

<llo_original>
// kernel: tpu_custom_call.1
$region0: #{tpu_custom_call.1}
  #allocation0 [shape = 'u32[]', space=smem, size = 0x4, offset = 0x4, fixed_abs, tag = 'smem constant byte address 0x4 - core index']
  #allocation1 [shape = 'u32[144,128]{1,0:T(1,128)}', space=vmem, size = 0x12000, scoped, tag = 'internal scratch']
  #allocation2 [shape = 'f32[1,4]{1,0:T(1,128)}', space=vmem, size = 0x200, scoped, tag = 'scratch operand']
  %s0 = inlined_call_operand.vmem [shape: f32[8,256], index: 0, kind: input, shape index: {}]
  %s1 = inlined_call_operand.vmem [shape: f32[8,8], index: 1, kind: input, shape index: {}]
  %s2 = inlined_call_operand.vmem [shape: f32[256,64], index: 2, kind: input, shape index: {}]
  %s3 = inlined_call_operand.vmem [shape: f32[1,64], index: 3, kind: input, shape index: {}]
  %s4 = inlined_call_operand.vmem [shape: f32[64,128], index: 4, kind: input, shape index: {}]
  %s5 = inlined_call_operand.vmem [shape: f32[1,128], index: 5, kind: input, shape index: {}]
  %s6 = inlined_call_operand.hbm [shape: f32[1,128], index: 6, kind: output, shape index: {}]
  %s7 = sld [smem:[#allocation0]]
  $region42: #{tpu_custom_call.1} parent=0
    _
  %s9 = ssub.s32 1, %s7
  %s10 = scalar_select 0, %s9, %s7
  $region1: #{tpu_custom_call.1} parent=0
    #allocation3 [shape = 'u8[512]{0}', space=vmem, size = 0x400, scoped, tag = 'output window, operand 0, single buffered']
    #allocation4 [shape = 's32[1]{0}', space=sflag, size = 0x4, scoped, tag = 'scoped memory for tpu_custom_call.1']
    %11 = vsyncpa [#allocation4], 0
    // Predicated region
    $region2: #{tpu_custom_call.1} parent=1 // pred_check
      _
    $region3: #{tpu_custom_call.1} parent=1 // pred_check_branch
      %13 = sbr.rel (0) target = $region5
    $region4: #{tpu_custom_call.1} parent=1 // pred_region
      %s14 = sadd.s32 0, 0
      %p15 = scmp.lt.s32.totalorder %s14, 0
      %s16 = scalar_select %p15, %s14, 0
      %s17 = smul.addr %s16, 2
      %s18 = smul.addr %s17, 8
      %s19 = scalar_lea.vmem %s0, %s18
      %s20 = sadd.s32 0, 0
    $region5: #{tpu_custom_call.1} parent=1 // pred_fallthru
      _
    // Predicated region
    $region6: #{tpu_custom_call.1} parent=1 // pred_check
      _
    $region7: #{tpu_custom_call.1} parent=1 // pred_check_branch
      %22 = sbr.rel (0) target = $region9
    $region8: #{tpu_custom_call.1} parent=1 // pred_region
      %s23 = sadd.s32 0, 0
      %p24 = scmp.lt.s32.totalorder %s23, 0
      %s25 = scalar_select %p24, %s23, 0
      %s26 = smul.addr %s25, 8
      %s27 = scalar_lea.vmem %s1, %s26
      %s28 = sadd.s32 0, 0
    $region9: #{tpu_custom_call.1} parent=1 // pred_fallthru
      _
    // Predicated region
    $region10: #{tpu_custom_call.1} parent=1 // pred_check
      _
    $region11: #{tpu_custom_call.1} parent=1 // pred_check_branch
      %30 = sbr.rel (0) target = $region13
    $region12: #{tpu_custom_call.1} parent=1 // pred_region
      _
    $region13: #{tpu_custom_call.1} parent=1 // pred_fallthru
      _
    // Predicated region
    $region14: #{tpu_custom_call.1} parent=1 // pred_check
      _
    $region15: #{tpu_custom_call.1} parent=1 // pred_check_branch
      %32 = sbr.rel (0) target = $region17
    $region16: #{tpu_custom_call.1} parent=1 // pred_region
      _
    $region17: #{tpu_custom_call.1} parent=1 // pred_fallthru
      _
    // Predicated region
    $region18: #{tpu_custom_call.1} parent=1 // pred_check
      _
    $region19: #{tpu_custom_call.1} parent=1 // pred_check_branch
      %34 = sbr.rel (0) target = $region21
    $region20: #{tpu_custom_call.1} parent=1 // pred_region
      _
    $region21: #{tpu_custom_call.1} parent=1 // pred_fallthru
      _
    // Predicated region
    $region22: #{tpu_custom_call.1} parent=1 // pred_check
      _
    $region23: #{tpu_custom_call.1} parent=1 // pred_check_branch
      %36 = sbr.rel (0) target = $region25
    $region24: #{tpu_custom_call.1} parent=1 // pred_region
      _
    $region25: #{tpu_custom_call.1} parent=1 // pred_fallthru
      _
    %s37 = sadd.s32 0, 0
    %p38 = scmp.lt.s32.totalorder %s37, 0
    %s39 = scalar_select %p38, %s37, 0
    %s40 = smul.addr %s39, 2
    %s41 = smul.addr %s40, 8
    %s42 = scalar_lea.vmem %s0, %s41
    %s43 = sadd.s32 0, 0
    %p44 = scmp.lt.s32.totalorder %s43, 0
    %s45 = scalar_select %p44, %s43, 0
    %s46 = smul.addr %s45, 8
    %s47 = scalar_lea.vmem %s1, %s46
    %s48 = sadd.s32 0, 0
    %p49 = scmp.lt.s32.totalorder %s48, 0
    %s50 = scalar_select %p49, %s48, 0
    %s51 = smul.addr %s50, 2
    %s52 = smul.addr %s51, 8
    %s53 = scalar_lea.vmem %s0, %s52
    %s54 = sadd.s32 0, 0
    %s55 = sadd.s32 0, 0
    %p56 = scmp.lt.s32.totalorder %s55, 0
    %s57 = scalar_select %p56, %s55, 0
    %s58 = smul.addr %s57, 8
    %s59 = scalar_lea.vmem %s1, %s58
    %s60 = sadd.s32 0, 0
    %v61 = vld [vmem:[%s53] sm:$0xff]
    %v62 = vld [vmem:[%s53 + $0x8] sm:$0xff]
    %v63 = vld [vmem:[%s2] sm:$0xff]
    %v64 = vld [vmem:[%s2 + $0x8] sm:$0xff]
    %v65 = vld [vmem:[%s2 + $0x10] sm:$0xff]
    %v66 = vld [vmem:[%s2 + $0x18] sm:$0xff]
    %v67 = vld [vmem:[%s2 + $0x20] sm:$0xff]
    %v68 = vld [vmem:[%s2 + $0x28] sm:$0xff]
    %v69 = vld [vmem:[%s2 + $0x30] sm:$0xff]
    %v70 = vld [vmem:[%s2 + $0x38] sm:$0xff]
    %v71 = vld [vmem:[%s2 + $0x40] sm:$0xff]
    %v72 = vld [vmem:[%s2 + $0x48] sm:$0xff]
    %v73 = vld [vmem:[%s2 + $0x50] sm:$0xff]
    %v74 = vld [vmem:[%s2 + $0x58] sm:$0xff]
    %v75 = vld [vmem:[%s2 + $0x60] sm:$0xff]
    %v76 = vld [vmem:[%s2 + $0x68] sm:$0xff]
    %v77 = vld [vmem:[%s2 + $0x70] sm:$0xff]
    %v78 = vld [vmem:[%s2 + $0x78] sm:$0xff]
    %v79 = vld [vmem:[%s2 + $0x80] sm:$0xff]
    %v80 = vld [vmem:[%s2 + $0x88] sm:$0xff]
    %v81 = vld [vmem:[%s2 + $0x90] sm:$0xff]
    %v82 = vld [vmem:[%s2 + $0x98] sm:$0xff]
    %v83 = vld [vmem:[%s2 + $0xa0] sm:$0xff]
    %v84 = vld [vmem:[%s2 + $0xa8] sm:$0xff]
    %v85 = vld [vmem:[%s2 + $0xb0] sm:$0xff]
    %v86 = vld [vmem:[%s2 + $0xb8] sm:$0xff]
    %v87 = vld [vmem:[%s2 + $0xc0] sm:$0xff]
    %v88 = vld [vmem:[%s2 + $0xc8] sm:$0xff]
    %v89 = vld [vmem:[%s2 + $0xd0] sm:$0xff]
    %v90 = vld [vmem:[%s2 + $0xd8] sm:$0xff]
    %v91 = vld [vmem:[%s2 + $0xe0] sm:$0xff]
    %v92 = vld [vmem:[%s2 + $0xe8] sm:$0xff]
    %v93 = vld [vmem:[%s2 + $0xf0] sm:$0xff]
    %v94 = vld [vmem:[%s2 + $0xf8] sm:$0xff]
    %v95 = vld [vmem:[%s3] sm:$0x1]
    %v97 = vlaneseq
    %v98 = vshrl.u32 %v97, 7
    %v99 = vsub.s32 0, %v98
    %v100 = vrot.slane %v95, %v99
    %102 = vmatprep.subr.mxu0 0.0
    %103 = vmatpush1.msra.mxu0 %v63
    %104 = vmatprep.subr.mxu0 0.0
    %105 = vmatpush1.msra.mxu0 %v64
    %106 = vmatprep.subr.mxu0 0.0
    %107 = vmatpush1.msra.mxu0 %v65
    %108 = vmatprep.subr.mxu0 0.0
    %109 = vmatpush1.msra.mxu0 %v66
    %110 = vmatprep.subr.mxu0 0.0
    %111 = vmatpush1.msra.mxu0 %v67
    %112 = vmatprep.subr.mxu0 0.0
    %113 = vmatpush1.msra.mxu0 %v68
    %114 = vmatprep.subr.mxu0 0.0
    %115 = vmatpush1.msra.mxu0 %v69
    %116 = vmatprep.subr.mxu0 0.0
    %117 = vmatpush1.msra.mxu0 %v70
    %118 = vmatprep.subr.mxu0 0.0
    %119 = vmatpush1.msra.mxu0 %v71
    %120 = vmatprep.subr.mxu0 0.0
    %121 = vmatpush1.msra.mxu0 %v72
    %122 = vmatprep.subr.mxu0 0.0
    %123 = vmatpush1.msra.mxu0 %v73
    %124 = vmatprep.subr.mxu0 0.0
    %125 = vmatpush1.msra.mxu0 %v74
    %126 = vmatprep.subr.mxu0 0.0
    %127 = vmatpush1.msra.mxu0 %v75
    %128 = vmatprep.subr.mxu0 0.0
    %129 = vmatpush1.msra.mxu0 %v76
    %130 = vmatprep.subr.mxu0 0.0
    %131 = vmatpush1.msra.mxu0 %v77
    %132 = vmatprep.subr.mxu0 0.0
    %133 = vmatpush1.msra.mxu0 %v78
    %134 = vmatprep.subr.mxu0 0.0
    %135 = vmatpush1.msra.mxu0 %v79
    %136 = vmatprep.subr.mxu0 0.0
    %137 = vmatpush1.msra.mxu0 %v80
    %138 = vmatprep.subr.mxu0 0.0
    %139 = vmatpush1.msra.mxu0 %v81
    %140 = vmatprep.subr.mxu0 0.0
    %141 = vmatpush1.msra.mxu0 %v82
    %142 = vmatprep.subr.mxu0 0.0
    %143 = vmatpush1.msra.mxu0 %v83
    %144 = vmatprep.subr.mxu0 0.0
    %145 = vmatpush1.msra.mxu0 %v84
    %146 = vmatprep.subr.mxu0 0.0
    %147 = vmatpush1.msra.mxu0 %v85
    %148 = vmatprep.subr.mxu0 0.0
    %149 = vmatpush1.msra.mxu0 %v86
    %150 = vmatprep.subr.mxu0 0.0
    %151 = vmatpush1.msra.mxu0 %v87
    %152 = vmatprep.subr.mxu0 0.0
    %153 = vmatpush1.msra.mxu0 %v88
    %154 = vmatprep.subr.mxu0 0.0
    %155 = vmatpush1.msra.mxu0 %v89
    %156 = vmatprep.subr.mxu0 0.0
    %157 = vmatpush1.msra.mxu0 %v90
    %158 = vmatprep.subr.mxu0 0.0
    %159 = vmatpush1.msra.mxu0 %v91
    %160 = vmatprep.subr.mxu0 0.0
    %161 = vmatpush1.msra.mxu0 %v92
    %162 = vmatprep.subr.mxu0 0.0
    %163 = vmatpush1.msra.mxu0 %v93
    %164 = vmatprep.subr.mxu0 0.0
    %165 = vmatpush1.msra.mxu0 %v94
    %166 = vmatprep.mubr.f32.mxu0 %v62
    %167 = vmatmul.mubr.f32.gmra.mrb[0].mxu0 %v61
    %v168 = vpop.f32.mrb[0].mxu0
    %v169 = vadd.f32 %v100, %v168
    %v170 = vpop.f32.mrb[0].mxu0
    %171 = vdwg.mxu0
    %v172 = vtanh.pop %v169
    %v173 = vld [vmem:[%s4] sm:$0xff]
    %v174 = vld [vmem:[%s4 + $0x8] sm:$0xff]
    %v175 = vld [vmem:[%s4 + $0x10] sm:$0xff]
    %v176 = vld [vmem:[%s4 + $0x18] sm:$0xff]
    %v177 = vld [vmem:[%s4 + $0x20] sm:$0xff]
    %v178 = vld [vmem:[%s4 + $0x28] sm:$0xff]
    %v179 = vld [vmem:[%s4 + $0x30] sm:$0xff]
    %v180 = vld [vmem:[%s4 + $0x38] sm:$0xff]
    %v181 = vld [vmem:[%s5] sm:$0x1]
    %v183 = vlaneseq
    %v184 = vshrl.u32 %v183, 7
    %v185 = vsub.s32 0, %v184
    %v186 = vrot.slane %v181, %v185
    %vm188 = vcmask 523264
    %v190 = vsel %vm188, %v172, 0
    %192 = vmatprep.subr.mxu0 0.0
    %193 = vmatpush1.msra.mxu0 %v173
    %194 = vmatprep.subr.mxu0 0.0
    %195 = vmatpush1.msra.mxu0 %v174
    %196 = vmatprep.subr.mxu0 0.0
    %197 = vmatpush1.msra.mxu0 %v175
    %198 = vmatprep.subr.mxu0 0.0
    %199 = vmatpush1.msra.mxu0 %v176
    %200 = vmatprep.subr.mxu0 0.0
    %201 = vmatpush1.msra.mxu0 %v177
    %202 = vmatprep.subr.mxu0 0.0
    %203 = vmatpush1.msra.mxu0 %v178
    %204 = vmatprep.subr.mxu0 0.0
    %205 = vmatpush1.msra.mxu0 %v179
    %206 = vmatprep.subr.mxu0 0.0
    %207 = vmatpush1.msra.mxu0 %v180
    %208 = vmatprep.subr.mxu0 0.0
    %209 = vmatpush1.msra.mxu0 0.0
    %210 = vmatprep.subr.mxu0 0.0
    %211 = vmatpush1.msra.mxu0 0.0
    %212 = vmatprep.subr.mxu0 0.0
    %213 = vmatpush1.msra.mxu0 0.0
    %214 = vmatprep.subr.mxu0 0.0
    %215 = vmatpush1.msra.mxu0 0.0
    %216 = vmatprep.subr.mxu0 0.0
    %217 = vmatpush1.msra.mxu0 0.0
    %218 = vmatprep.subr.mxu0 0.0
    %219 = vmatpush1.msra.mxu0 0.0
    %220 = vmatprep.subr.mxu0 0.0
    %221 = vmatpush1.msra.mxu0 0.0
    %222 = vmatprep.subr.mxu0 0.0
    %223 = vmatpush1.msra.mxu0 0.0
    %224 = vmatprep.subr.mxu0 0.0
    %225 = vmatpush1.msra.mxu0 0.0
    %226 = vmatprep.subr.mxu0 0.0
    %227 = vmatpush1.msra.mxu0 0.0
    %228 = vmatprep.subr.mxu0 0.0
    %229 = vmatpush1.msra.mxu0 0.0
    %230 = vmatprep.subr.mxu0 0.0
    %231 = vmatpush1.msra.mxu0 0.0
    %232 = vmatprep.subr.mxu0 0.0
    %233 = vmatpush1.msra.mxu0 0.0
    %234 = vmatprep.subr.mxu0 0.0
    %235 = vmatpush1.msra.mxu0 0.0
    %236 = vmatprep.subr.mxu0 0.0
    %237 = vmatpush1.msra.mxu0 0.0
    %238 = vmatprep.subr.mxu0 0.0
    %239 = vmatpush1.msra.mxu0 0.0
    %240 = vmatprep.subr.mxu0 0.0
    %241 = vmatpush1.msra.mxu0 0.0
    %242 = vmatprep.subr.mxu0 0.0
    %243 = vmatpush1.msra.mxu0 0.0
    %244 = vmatprep.subr.mxu0 0.0
    %245 = vmatpush1.msra.mxu0 0.0
    %246 = vmatprep.subr.mxu0 0.0
    %247 = vmatpush1.msra.mxu0 0.0
    %248 = vmatprep.subr.mxu0 0.0
    %249 = vmatpush1.msra.mxu0 0.0
    %250 = vmatprep.subr.mxu0 0.0
    %251 = vmatpush1.msra.mxu0 0.0
    %252 = vmatprep.subr.mxu0 0.0
    %253 = vmatpush1.msra.mxu0 0.0
    %254 = vmatprep.subr.mxu0 0.0
    %255 = vmatpush1.msra.mxu0 0.0
    %256 = vmatprep.mubr.f32.mxu0 0.0
    %257 = vmatmul.mubr.f32.gmra.mrb[0].mxu0 %v190
    %v258 = vpop.f32.mrb[0].mxu0
    %v259 = vadd.f32 %v186, %v258
    %v260 = vpop.f32.mrb[0].mxu0
    %261 = vdwg.mxu0
    %vm262 = vcmask 130048
    %v263 = vsel %vm262, %v259, -inf
    %264 = vmax.xlane.f32.xlu0 %v263
    %v265 = vpop.xlane.xlu0 %264
    %v266 = vsub.f32 %v259, %v265
    %v267 = vmul.f32 %v266, 1.442695
    %v268 = vpow.pop %v267
    %vm269 = vcmask 64512
    %v270 = vsel %vm269, %v268, 0.0
    %271 = vadd.xlane.f32.xlu0 %v270
    %v272 = vpop.xlane.xlu0 %271
    %274 = vrot.lane.b32.xlu0 %v268, 120
    %v275 = vpop.permute.xlu0 %274
    %v277 = vsel %vm269, %v275, 0.0
    %278 = vadd.xlane.f32.xlu0 %v277
    %v279 = vpop.xlane.xlu0 %278
    %v280 = vrcp.pop %v272
    %v281 = vmul.f32 %v268, %v280
    %v282 = vrcp.pop %v279
    %v283 = vmul.f32 %v268, %v282
    %v284 = vlog2.pop %v272
    %v285 = vmul.f32 %v284, 0.6931472
    %v286 = vlog2.pop %v279
    %v287 = vmul.f32 %v286, 0.6931472
    %v288 = vsub.f32 %v287, %v285
    %290 = vrot.lane.b32.xlu0 %v266, 8
    %v291 = vpop.permute.xlu0 %290
    %v293 = vsub.f32 %v266, %v291
    %295 = vrot.lane.b32.xlu0 %v293, 120
    %v296 = vpop.permute.xlu0 %295
    %v298 = vmul.f32 %v281, %v296
    %v299 = vsel %vm269, %v298, 0.0
    %300 = vadd.xlane.f32.xlu0 %v299
    %v301 = vpop.xlane.xlu0 %300
    %v302 = vsub.f32 %v288, %v301
    %v303 = vmul.f32 %v283, %v266
    %305 = vrot.lane.b32.xlu0 %v303, 120
    %v306 = vpop.permute.xlu0 %305
    %v308 = vsel %vm269, %v306, 0.0
    %309 = vadd.xlane.f32.xlu0 %v308
    %v310 = vpop.xlane.xlu0 %309
    %v311 = vsub.f32 %v287, %v310
    %v312 = vld [vmem:[%s59] sm:$0xff]
    %v313 = vcvt.f32.s32.to.zero.pseudo %v312
    %v314 = vlaneseq
    %v315 = vand.u32 %v314, 127
    %316 = vset.pattern.permute.xlu0 0
    %317 = vperm.xlu0 %316, %v313
    %v318 = vpop.permute.xlu0 %317
    %vm319 = vcmp.eq.s32.totalorder %v315, %v318
    %v320 = vsel %vm319, 1, 0
    %v321 = vcvt.s32.f32 %v320
    %v322 = vmul.f32 %v321, %v296
    %v323 = vsel %vm269, %v322, 0.0
    %324 = vadd.xlane.f32.xlu0 %v323
    %v325 = vpop.xlane.xlu0 %324
    %v326 = vsub.f32 %v325, %v288
    %v327 = vmul.f32 %v326, 1.442695
    %v328 = vpow.pop %v327
    %v329 = vmul.f32 %v328, %v312
    %v330 = vmax.f32 %v328, 0.85
    %v331 = vmin.f32 %v330, 1.15
    %v332 = vmul.f32 %v331, %v312
    %v333 = vmin.f32 %v329, %v332
    %335 = vrot.lane.b32.xlu0 %v312, 14
    %v336 = vpop.permute.xlu0 %335
    %v338 = vsub.f32 %v259, %v336
    %v339 = vmul.f32 %v338, %v338
    %341 = vrot.lane.b32.xlu0 %v333, 1
    %v342 = vpop.permute.xlu0 %341
    %345 = vrot.lane.b32.xlu0 %v339, 115
    %v346 = vpop.permute.xlu0 %345
    %vm348 = vcmask 7168
    %v349 = vsel %vm348, %v302, %v311
    %vm350 = vcmask 15360
    %v351 = vsel %vm350, %v349, %v342
    %vm352 = vcmask 23552
    %v353 = vsel %vm352, %v351, %v346
    %vm354 = vcmask 31744
    %v355 = vsel %vm354, %v353, 0.0
    %v356 = vrot.slane %v355, 4
    %v357 = vadd.f32 %v355, %v356
    %v358 = vrot.slane %v357, 2
    %v359 = vadd.f32 %v357, %v358
    %v360 = vrot.slane %v359, 1
    %v361 = vadd.f32 %v359, %v360
    %p362 = scmp.eq.s32.totalorder 0, 0
    // Predicated region
    $region26: #{tpu_custom_call.1} parent=1 // pred_check
      %p363 = pneg %p362
    $region27: #{tpu_custom_call.1} parent=1 // pred_check_branch
      %365 = sbr.rel (%p363) target = $region29
    $region28: #{tpu_custom_call.1} parent=1 // pred_region
      %vm366 = vcmask 24576
      %367 = vst.msk [vmem:[#allocation2] sm:$0x1] %vm366, 0.0
    $region29: #{tpu_custom_call.1} parent=1 // pred_fallthru
      _
    %v368 = vld [vmem:[#allocation2] sm:$0x1]
    %v369 = vadd.f32 %v368, %v361
    %vm370 = vcmask 24576
    %371 = vst.msk [vmem:[#allocation2] sm:$0x1] %vm370, %v369
    // Predicated region
    $region30: #{tpu_custom_call.1} parent=1 // pred_check
      %p372 = pneg %p362
    $region31: #{tpu_custom_call.1} parent=1 // pred_check_branch
      %374 = sbr.rel (%p372) target = $region33
    $region32: #{tpu_custom_call.1} parent=1 // pred_region
      %v375 = vlaneseq
      %v376 = vshrl.u32 %v375, 7
      %vm377 = vcmp.eq.s32.totalorder %v376, 0
      %vm378 = vcmp.eq.s32.totalorder %v315, 4
      %vm379 = vmand %vm377, %vm378
      %v380 = vsel %vm379, 0.125, 0.0
      %vm381 = vcmp.eq.s32.totalorder %v376, 1
      %vm382 = vcmp.eq.s32.totalorder %v315, 5
      %vm383 = vmand %vm381, %vm382
      %v384 = vsel %vm383, 0.125, 0.0
      %v385 = vadd.f32 %v380, %v384
      %vm386 = vcmp.eq.s32.totalorder %v315, 2
      %vm387 = vmand %vm381, %vm386
      %v388 = vsel %vm387, -0.00125, 0.0
      %v389 = vadd.f32 %v385, %v388
      %vm390 = vcmp.eq.s32.totalorder %v315, 0
      %vm391 = vmand %vm381, %vm390
      %v392 = vsel %vm391, -0.00125, 0.0
      %v393 = vadd.f32 %v389, %v392
      %vm394 = vcmp.eq.s32.totalorder %v376, 2
      %vm395 = vcmp.eq.s32.totalorder %v315, 1
      %vm396 = vmand %vm394, %vm395
      %v397 = vsel %vm396, -0.125, 0.0
      %v398 = vadd.f32 %v393, %v397
      %vm399 = vmand %vm394, %vm390
      %v400 = vsel %vm399, -0.125, 0.0
      %v401 = vadd.f32 %v398, %v400
      %vm402 = vcmp.eq.s32.totalorder %v376, 3
      %vm403 = vcmp.eq.s32.totalorder %v315, 3
      %vm404 = vmand %vm402, %vm403
      %v405 = vsel %vm404, 0.125, 0.0
      %v406 = vadd.f32 %v401, %v405
      %vm407 = vmand %vm402, %vm390
      %v408 = vsel %vm407, 0.125, 0.0
      %v409 = vadd.f32 %v406, %v408
      %v410 = vld [vmem:[#allocation2] sm:$0x1]
      %v412 = vsel %vm354, %v410, 0
      %vm414 = vcmask 1043456
      %v416 = vsel %vm414, %v409, 0
      %418 = vmatprep.subr.mxu0 0.0
      %419 = vmatpush1.msra.mxu0 %v416
      %420 = vmatprep.subr.mxu0 0.0
      %421 = vmatpush1.msra.mxu0 0.0
      %422 = vmatprep.subr.mxu0 0.0
      %423 = vmatpush1.msra.mxu0 0.0
      %424 = vmatprep.subr.mxu0 0.0
      %425 = vmatpush1.msra.mxu0 0.0
      %426 = vmatprep.subr.mxu0 0.0
      %427 = vmatpush1.msra.mxu0 0.0
      %428 = vmatprep.subr.mxu0 0.0
      %429 = vmatpush1.msra.mxu0 0.0
      %430 = vmatprep.subr.mxu0 0.0
      %431 = vmatpush1.msra.mxu0 0.0
      %432 = vmatprep.subr.mxu0 0.0
      %433 = vmatpush1.msra.mxu0 0.0
      %434 = vmatprep.subr.mxu0 0.0
      %435 = vmatpush1.msra.mxu0 0.0
      %436 = vmatprep.subr.mxu0 0.0
      %437 = vmatpush1.msra.mxu0 0.0
      %438 = vmatprep.subr.mxu0 0.0
      %439 = vmatpush1.msra.mxu0 0.0
      %440 = vmatprep.subr.mxu0 0.0
      %441 = vmatpush1.msra.mxu0 0.0
      %442 = vmatprep.subr.mxu0 0.0
      %443 = vmatpush1.msra.mxu0 0.0
      %444 = vmatprep.subr.mxu0 0.0
      %445 = vmatpush1.msra.mxu0 0.0
      %446 = vmatprep.subr.mxu0 0.0
      %447 = vmatpush1.msra.mxu0 0.0
      %448 = vmatprep.subr.mxu0 0.0
      %449 = vmatpush1.msra.mxu0 0.0
      %450 = vmatprep.subr.mxu0 0.0
      %451 = vmatpush1.msra.mxu0 0.0
      %452 = vmatprep.subr.mxu0 0.0
      %453 = vmatpush1.msra.mxu0 0.0
      %454 = vmatprep.subr.mxu0 0.0
      %455 = vmatpush1.msra.mxu0 0.0
      %456 = vmatprep.subr.mxu0 0.0
      %457 = vmatpush1.msra.mxu0 0.0
      %458 = vmatprep.subr.mxu0 0.0
      %459 = vmatpush1.msra.mxu0 0.0
      %460 = vmatprep.subr.mxu0 0.0
      %461 = vmatpush1.msra.mxu0 0.0
      %462 = vmatprep.subr.mxu0 0.0
      %463 = vmatpush1.msra.mxu0 0.0
      %464 = vmatprep.subr.mxu0 0.0
      %465 = vmatpush1.msra.mxu0 0.0
      %466 = vmatprep.subr.mxu0 0.0
      %467 = vmatpush1.msra.mxu0 0.0
      %468 = vmatprep.subr.mxu0 0.0
      %469 = vmatpush1.msra.mxu0 0.0
      %470 = vmatprep.subr.mxu0 0.0
      %471 = vmatpush1.msra.mxu0 0.0
      %472 = vmatprep.subr.mxu0 0.0
      %473 = vmatpush1.msra.mxu0 0.0
      %474 = vmatprep.subr.mxu0 0.0
      %475 = vmatpush1.msra.mxu0 0.0
      %476 = vmatprep.subr.mxu0 0.0
      %477 = vmatpush1.msra.mxu0 0.0
      %478 = vmatprep.subr.mxu0 0.0
      %479 = vmatpush1.msra.mxu0 0.0
      %480 = vmatprep.subr.mxu0 0.0
      %481 = vmatpush1.msra.mxu0 0.0
      %482 = vmatprep.mubr.f32.mxu0 0.0
      %483 = vmatmul.mubr.f32.gmra.mrb[0].mxu0 %v412
      %v484 = vpop.f32.mrb[0].mxu0
      %v485 = vadd.f32 0.0, %v484
      %v486 = vpop.f32.mrb[0].mxu0
      %487 = vdwg.mxu0
      %488 = vst [vmem:[#allocation3] sm:$0x1] %v485
    $region33: #{tpu_custom_call.1} parent=1 // pred_fallthru
      _
    // Predicated region
    $region34: #{tpu_custom_call.1} parent=1 // pred_check
      _
    $region35: #{tpu_custom_call.1} parent=1 // pred_check_branch
      %490 = sbr.rel (0) target = $region37
    $region36: #{tpu_custom_call.1} parent=1 // pred_region
      %s492 = ssub.s32 16, 16
      %493 = vsyncadd [#allocation4], %s492
      %s495 = sshll.u32 [#allocation3], 4
      %s496 = int_to_ptr.vmem [resolvable:$true] %s495
      %498 = dma.vmem_to_hbm [thread:$0]  %s496, 16, %s6, [#allocation4]
    $region37: #{tpu_custom_call.1} parent=1 // pred_fallthru
      _
    // Predicated region
    $region38: #{tpu_custom_call.1} parent=1 // pred_check
      _
    $region39: #{tpu_custom_call.1} parent=1 // pred_check_branch
      %500 = sbr.rel (0) target = $region41
    $region40: #{tpu_custom_call.1} parent=1 // pred_region
      %501 = dma.done [#allocation4], 16
    $region41: #{tpu_custom_call.1} parent=1 // pred_fallthru
      _
    %502 = vsyncpa [#allocation4], 1

</llo_original>
